<compile_context>
chip_gen: v6e
topology: v6e:2x2x1
jax: 0.10.0
libtpu: 0.0.40
codegen_flags: <defaults>
</compile_context>

<pallas_src>
import math

import jax
import jax.numpy as jnp
from jax import lax
from jax.experimental import pallas as pl
from jax.experimental.pallas import tpu as pltpu


def _generator_kernel(x_ref, w1_ref, b1_ref, w2_ref, b2_ref, w3_ref, b3_ref,
                      o_ref):
    """One batch tile.

    x_ref : (TB, D) f32   -- natural (batch, feature) layout
    o_ref : (3, TB) f32   -- feature-major, lane-dense output tile
    """
    x_bf = x_ref[...].astype(jnp.bfloat16)          # cast in-kernel on VMEM data

    # layer 1: contract D (minor dim of BOTH operands) -> (15, TB) == W1 @ x^T
    h1 = lax.dot_general(w1_ref[...], x_bf,
                         dimension_numbers=(((1,), (1,)), ((), ())),
                         preferred_element_type=jnp.float32)
    h1 = jnp.maximum(h1 + b1_ref[...], 0.0)                           # ReLU, f32

    # layer 2: (25, 15) @ (15, TB) -> (25, TB)
    h2 = jnp.dot(w2_ref[...], h1.astype(jnp.bfloat16),
                 preferred_element_type=jnp.float32)
    h2 = jnp.maximum(h2 + b2_ref[...], 0.0)                           # ReLU, f32

    # layer 3: (3, 25) @ (25, TB) -> (3, TB)
    h3 = jnp.dot(w3_ref[...], h2.astype(jnp.bfloat16),
                 preferred_element_type=jnp.float32)
    o_ref[...] = jnp.tanh(h3 + b3_ref[...])                           # Tanh, f32


def _round_up(n, m):
    return ((n + m - 1) // m) * m


def _select_tile(B, tb):
    """Pick the batch-tile size and grid length."""
    if B <= 1024:
        # One tile covering the full batch: block == full array, so any B
        # (including non-multiples of 8/128) is legal; no padding needed.
        return B, 1
    # Multi-tile: keep tb a multiple of 512 (fills the MXU N dimension on all
    # generations) and cap it so the grid has >= 2 steps -> both v7x
    # TensorCores get work under dimension_semantics=("parallel",).
    tb = _round_up(max(tb, 512), 512)
    tb = min(tb, _round_up(pl.cdiv(B, 2), 512))
    return tb, pl.cdiv(B, tb)


def prepare_params(params):
    """One-time conversion of f32 PyTorch-layout params to kernel operand
    dtypes (bf16 weights, f32 (out, 1) biases).  Call once, outside the
    per-forward path."""
    w1, b1, w2, b2, w3, b3 = params
    bf = jnp.bfloat16
    return (w1.astype(bf), b1, w2.astype(bf), b2, w3.astype(bf), b3)


def generator_forward(x, prepared_params, *, tb=2048):
    """x: (B, latent_dim) f32 -> (B, 3) f32  (same semantics as Generator.forward)."""
    w1, b1, w2, b2, w3, b3 = prepared_params
    B, D = x.shape
    tb_eff, steps = _select_tile(B, tb)

    # Weights/biases: one full-array block, constant index_map -> VMEM-resident
    # across all grid steps.
    def const_spec(a):
        return pl.BlockSpec(a.shape, lambda i: (0, 0))

    out_t = pl.pallas_call(
        _generator_kernel,
        out_shape=jax.ShapeDtypeStruct((3, B), jnp.float32),
        grid=(steps,),
        in_specs=[
            pl.BlockSpec((tb_eff, D), lambda i: (i, 0)),   # x tile, natural layout
            const_spec(w1), const_spec(b1),
            const_spec(w2), const_spec(b2),
            const_spec(w3), const_spec(b3),
        ],
        out_specs=pl.BlockSpec((3, tb_eff), lambda i: (0, i)),  # lane-dense store
        compiler_params=pltpu.CompilerParams(
            dimension_semantics=("parallel",)),            # megacore split on v7x
    )(x, w1, b1, w2, b2, w3, b3)

    # Module semantics require (B, 3); consumers that can accept the
    # feature-major (3, B) result should take `out_t` directly and skip this
    # (it is a small extra HBM pass on a 12-byte-per-row array).
    return out_t.T


def init_params(key, latent_dim):
    """Deterministic init mirroring the PyTorch module's __init__.

    linear1 / linear2 weights: kaiming_uniform_ (a=0 -> bound sqrt(6/fan_in)).
    linear3 weight + all biases: nn.Linear defaults (bound 1/sqrt(fan_in)).
    Weights stored (out_features, in_features) == PyTorch layout, f32.
    """
    ks = jax.random.split(key, 6)

    def kaiming_w(k, fan_out, fan_in):
        bound = math.sqrt(6.0 / fan_in)
        return jax.random.uniform(k, (fan_out, fan_in), jnp.float32,
                                  -bound, bound)

    def default_w(k, fan_out, fan_in):
        bound = 1.0 / math.sqrt(fan_in)
        return jax.random.uniform(k, (fan_out, fan_in), jnp.float32,
                                  -bound, bound)

    def default_b(k, fan_out, fan_in):
        bound = 1.0 / math.sqrt(fan_in)
        return jax.random.uniform(k, (fan_out, 1), jnp.float32,
                                  -bound, bound)

    w1 = kaiming_w(ks[0], 15, latent_dim)
    b1 = default_b(ks[1], 15, latent_dim)
    w2 = kaiming_w(ks[2], 25, 15)
    b2 = default_b(ks[3], 25, 15)
    w3 = default_w(ks[4], 3, 25)
    b3 = default_b(ks[5], 3, 25)
    return (w1, b1, w2, b2, w3, b3)


def _reference_forward(x, params):
    """Pure-JAX reference mirroring the kernel's bf16 matmul operands."""
    w1, b1, w2, b2, w3, b3 = params
    bf = jnp.bfloat16

    def lin(h, w, b):
        return jnp.dot(h.astype(bf), w.T.astype(bf),
                       preferred_element_type=jnp.float32) + b.T

    h1 = jnp.maximum(lin(x, w1, b1), 0.0)
    h2 = jnp.maximum(lin(h1, w2, b2), 0.0)
    return jnp.tanh(lin(h2, w3, b3))


if __name__ == "__main__":
    key = jax.random.PRNGKey(0)
    k_x, k_p, k_x2 = jax.random.split(key, 3)

    latent_dim = 32
    batch = 8

    params = init_params(k_p, latent_dim)
    kparams = prepare_params(params)      # one-time bf16 weight cast
    fwd = jax.jit(generator_forward)

    # Small demo batch (single full-array tile path).
    x = jax.random.normal(k_x, (batch, latent_dim), jnp.float32)
    out = jax.block_until_ready(fwd(x, kparams))
    ref = _reference_forward(x, params)
    assert out.shape == (batch, 3)
    assert jnp.allclose(out, ref, atol=1e-4, rtol=1e-4), \
        float(jnp.max(jnp.abs(out - ref)))

    # Larger batch: exercises the multi-tile grid with a ragged last tile
    # (tb=1024, grid=2) and the megacore-parallel path.
    x2 = jax.random.normal(k_x2, (1536, latent_dim), jnp.float32)
    out2 = jax.block_until_ready(fwd(x2, kparams))
    ref2 = _reference_forward(x2, params)
    assert out2.shape == (1536, 3)
    assert jnp.allclose(out2, ref2, atol=1e-4, rtol=1e-4), \
        float(jnp.max(jnp.abs(out2 - ref2)))

    print("KERNEL_OK")
</pallas_src>

<mosaic_0001>
module attributes {stable_mosaic.version = 11 : i64} {
  func.func @_generator_kernel(%arg0: i32, %arg1: memref<8x32xf32, #tpu.memory_space<vmem>>, %arg2: memref<15x32xbf16, #tpu.memory_space<vmem>>, %arg3: memref<15x1xf32, #tpu.memory_space<vmem>>, %arg4: memref<25x15xbf16, #tpu.memory_space<vmem>>, %arg5: memref<25x1xf32, #tpu.memory_space<vmem>>, %arg6: memref<3x25xbf16, #tpu.memory_space<vmem>>, %arg7: memref<3x1xf32, #tpu.memory_space<vmem>>, %arg8: memref<3x8xf32, #tpu.memory_space<vmem>>) attributes {dimension_semantics = [#tpu.dimension_semantics<parallel>], iteration_bounds = array<i64: 1>, scalar_prefetch = 0 : i64, scratch_operands = 0 : i64, tpu.core_type = #tpu.core_type<tc>, window_params = [{transform_indices = @transform_0, window_bounds = array<i64: 8, 32>}, {pipeline_mode = #tpu.pipeline_mode<synchronous>, transform_indices = @transform_1, window_bounds = array<i64: 15, 32>}, {pipeline_mode = #tpu.pipeline_mode<synchronous>, transform_indices = @transform_2, window_bounds = array<i64: 15, 1>}, {pipeline_mode = #tpu.pipeline_mode<synchronous>, transform_indices = @transform_3, window_bounds = array<i64: 25, 15>}, {pipeline_mode = #tpu.pipeline_mode<synchronous>, transform_indices = @transform_4, window_bounds = array<i64: 25, 1>}, {pipeline_mode = #tpu.pipeline_mode<synchronous>, transform_indices = @transform_5, window_bounds = array<i64: 3, 25>}, {pipeline_mode = #tpu.pipeline_mode<synchronous>, transform_indices = @transform_6, window_bounds = array<i64: 3, 1>}, {transform_indices = @transform_7, window_bounds = array<i64: 3, 8>}]} {
    %c0 = arith.constant 0 : index
    %c0_0 = arith.constant 0 : index
    %0 = vector.load %arg1[%c0, %c0_0] : memref<8x32xf32, #tpu.memory_space<vmem>>, vector<8x32xf32>
    %1 = arith.truncf %0 : vector<8x32xf32> to vector<8x32xbf16>
    %c0_1 = arith.constant 0 : index
    %c0_2 = arith.constant 0 : index
    %2 = vector.load %arg2[%c0_1, %c0_2] : memref<15x32xbf16, #tpu.memory_space<vmem>>, vector<15x32xbf16>
    %cst = arith.constant dense<0.000000e+00> : vector<15x8xf32>
    %3 = tpu.matmul %2, %1, %cst {dimension_numbers = #tpu.dot_dimension_numbers<[1], [1], [0], [0], [0, 0, 1, 0], [], []>} : vector<15x32xbf16>, vector<8x32xbf16>, vector<15x8xf32> -> vector<15x8xf32>
    %c0_3 = arith.constant 0 : index
    %c0_4 = arith.constant 0 : index
    %4 = vector.load %arg3[%c0_3, %c0_4] : memref<15x1xf32, #tpu.memory_space<vmem>>, vector<15x1xf32>
    %5 = vector.broadcast %4 : vector<15x1xf32> to vector<15x8xf32>
    %6 = arith.addf %3, %5 : vector<15x8xf32>
    %cst_5 = arith.constant 0.000000e+00 : f32
    %7 = vector.broadcast %cst_5 : f32 to vector<15x8xf32>
    %8 = arith.maximumf %6, %7 : vector<15x8xf32>
    %c0_6 = arith.constant 0 : index
    %c0_7 = arith.constant 0 : index
    %9 = vector.load %arg4[%c0_6, %c0_7] : memref<25x15xbf16, #tpu.memory_space<vmem>>, vector<25x15xbf16>
    %10 = arith.truncf %8 : vector<15x8xf32> to vector<15x8xbf16>
    %cst_8 = arith.constant dense<0.000000e+00> : vector<25x8xf32>
    %11 = tpu.matmul %9, %10, %cst_8 {dimension_numbers = #tpu.dot_dimension_numbers<[1], [0], [0], [1], [0, 0, 1, 1], [], []>} : vector<25x15xbf16>, vector<15x8xbf16>, vector<25x8xf32> -> vector<25x8xf32>
    %c0_9 = arith.constant 0 : index
    %c0_10 = arith.constant 0 : index
    %12 = vector.load %arg5[%c0_9, %c0_10] : memref<25x1xf32, #tpu.memory_space<vmem>>, vector<25x1xf32>
    %13 = vector.broadcast %12 : vector<25x1xf32> to vector<25x8xf32>
    %14 = arith.addf %11, %13 : vector<25x8xf32>
    %cst_11 = arith.constant 0.000000e+00 : f32
    %15 = vector.broadcast %cst_11 : f32 to vector<25x8xf32>
    %16 = arith.maximumf %14, %15 : vector<25x8xf32>
    %c0_12 = arith.constant 0 : index
    %c0_13 = arith.constant 0 : index
    %17 = vector.load %arg6[%c0_12, %c0_13] : memref<3x25xbf16, #tpu.memory_space<vmem>>, vector<3x25xbf16>
    %18 = arith.truncf %16 : vector<25x8xf32> to vector<25x8xbf16>
    %cst_14 = arith.constant dense<0.000000e+00> : vector<3x8xf32>
    %19 = tpu.matmul %17, %18, %cst_14 {dimension_numbers = #tpu.dot_dimension_numbers<[1], [0], [0], [1], [0, 0, 1, 1], [], []>} : vector<3x25xbf16>, vector<25x8xbf16>, vector<3x8xf32> -> vector<3x8xf32>
    %c0_15 = arith.constant 0 : index
    %c0_16 = arith.constant 0 : index
    %20 = vector.load %arg7[%c0_15, %c0_16] : memref<3x1xf32, #tpu.memory_space<vmem>>, vector<3x1xf32>
    %21 = vector.broadcast %20 : vector<3x1xf32> to vector<3x8xf32>
    %22 = arith.addf %19, %21 : vector<3x8xf32>
    %23 = math.tanh %22 : vector<3x8xf32>
    %c0_17 = arith.constant 0 : index
    %c0_18 = arith.constant 0 : index
    %24 = vector.load %arg8[%c0_17, %c0_18] : memref<3x8xf32, #tpu.memory_space<vmem>>, vector<3x8xf32>
    tpu.vector_store %arg8[%c0_17, %c0_18], %23 {strides = array<i32>} : memref<3x8xf32, #tpu.memory_space<vmem>>, vector<3x8xf32>,
    return
  }
  func.func @transform_0(%arg0: i32) -> (i32, i32) {
    %c0_i32 = arith.constant 0 : i32
    %c0_i32_0 = arith.constant 0 : i32
    return %arg0, %c0_i32 : i32, i32
  }
  func.func @transform_1(%arg0: i32) -> (i32, i32) {
    %c0_i32 = arith.constant 0 : i32
    %c0_i32_0 = arith.constant 0 : i32
    %c0_i32_1 = arith.constant 0 : i32
    return %c0_i32, %c0_i32_0 : i32, i32
  }
  func.func @transform_2(%arg0: i32) -> (i32, i32) {
    %c0_i32 = arith.constant 0 : i32
    %c0_i32_0 = arith.constant 0 : i32
    %c0_i32_1 = arith.constant 0 : i32
    return %c0_i32, %c0_i32_0 : i32, i32
  }
  func.func @transform_3(%arg0: i32) -> (i32, i32) {
    %c0_i32 = arith.constant 0 : i32
    %c0_i32_0 = arith.constant 0 : i32
    %c0_i32_1 = arith.constant 0 : i32
    return %c0_i32, %c0_i32_0 : i32, i32
  }
  func.func @transform_4(%arg0: i32) -> (i32, i32) {
    %c0_i32 = arith.constant 0 : i32
    %c0_i32_0 = arith.constant 0 : i32
    %c0_i32_1 = arith.constant 0 : i32
    return %c0_i32, %c0_i32_0 : i32, i32
  }
  func.func @transform_5(%arg0: i32) -> (i32, i32) {
    %c0_i32 = arith.constant 0 : i32
    %c0_i32_0 = arith.constant 0 : i32
    %c0_i32_1 = arith.constant 0 : i32
    return %c0_i32, %c0_i32_0 : i32, i32
  }
  func.func @transform_6(%arg0: i32) -> (i32, i32) {
    %c0_i32 = arith.constant 0 : i32
    %c0_i32_0 = arith.constant 0 : i32
    %c0_i32_1 = arith.constant 0 : i32
    return %c0_i32, %c0_i32_0 : i32, i32
  }
  func.func @transform_7(%arg0: i32) -> (i32, i32) {
    %c0_i32 = arith.constant 0 : i32
    %c0_i32_0 = arith.constant 0 : i32
    return %c0_i32, %arg0 : i32, i32
  }
}

</mosaic_0001>

<llo_original>
// kernel: generator_forward.1
$region0: #{generator_forward.1}
  #allocation0 [shape = 'u32[]', space=smem, size = 0x4, offset = 0x4, fixed_abs, tag = 'smem constant byte address 0x4 - core index']
  #allocation1 [shape = 'u32[144,128]{1,0:T(1,128)}', space=vmem, size = 0x12000, scoped, tag = 'internal scratch']
  %s0 = inlined_call_operand.vmem [shape: f32[8,32], index: 0, kind: input, shape index: {}]
  %s1 = inlined_call_operand.vmem [shape: bf16[15,32], index: 1, kind: input, shape index: {}]
  %s2 = inlined_call_operand.vmem [shape: f32[15,1], index: 2, kind: input, shape index: {}]
  %s3 = inlined_call_operand.vmem [shape: bf16[25,15], index: 3, kind: input, shape index: {}]
  %s4 = inlined_call_operand.vmem [shape: f32[25,1], index: 4, kind: input, shape index: {}]
  %s5 = inlined_call_operand.vmem [shape: bf16[3,25], index: 5, kind: input, shape index: {}]
  %s6 = inlined_call_operand.vmem [shape: f32[3,1], index: 6, kind: input, shape index: {}]
  %s7 = inlined_call_operand.hbm [shape: f32[3,8], index: 7, kind: output, shape index: {}]
  %s8 = sld [smem:[#allocation0]]
  $region38: #{generator_forward.1} parent=0
    _
  %s10 = ssub.s32 1, %s8
  %s11 = scalar_select 0, %s10, %s8
  $region1: #{generator_forward.1} parent=0
    #allocation2 [shape = 'u8[2048]{0}', space=vmem, size = 0x800, scoped, tag = 'output window, operand 0, single buffered']
    #allocation3 [shape = 's32[1]{0}', space=sflag, size = 0x4, scoped, tag = 'scoped memory for generator_forward.1']
    %12 = vsyncpa [#allocation3], 0
    // Predicated region
    $region2: #{generator_forward.1} parent=1 // pred_check
      _
    $region3: #{generator_forward.1} parent=1 // pred_check_branch
      %14 = sbr.rel (0) target = $region5
    $region4: #{generator_forward.1} parent=1 // pred_region
      _
    $region5: #{generator_forward.1} parent=1 // pred_fallthru
      _
    // Predicated region
    $region6: #{generator_forward.1} parent=1 // pred_check
      _
    $region7: #{generator_forward.1} parent=1 // pred_check_branch
      %16 = sbr.rel (0) target = $region9
    $region8: #{generator_forward.1} parent=1 // pred_region
      _
    $region9: #{generator_forward.1} parent=1 // pred_fallthru
      _
    // Predicated region
    $region10: #{generator_forward.1} parent=1 // pred_check
      _
    $region11: #{generator_forward.1} parent=1 // pred_check_branch
      %18 = sbr.rel (0) target = $region13
    $region12: #{generator_forward.1} parent=1 // pred_region
      _
    $region13: #{generator_forward.1} parent=1 // pred_fallthru
      _
    // Predicated region
    $region14: #{generator_forward.1} parent=1 // pred_check
      _
    $region15: #{generator_forward.1} parent=1 // pred_check_branch
      %20 = sbr.rel (0) target = $region17
    $region16: #{generator_forward.1} parent=1 // pred_region
      _
    $region17: #{generator_forward.1} parent=1 // pred_fallthru
      _
    // Predicated region
    $region18: #{generator_forward.1} parent=1 // pred_check
      _
    $region19: #{generator_forward.1} parent=1 // pred_check_branch
      %22 = sbr.rel (0) target = $region21
    $region20: #{generator_forward.1} parent=1 // pred_region
      _
    $region21: #{generator_forward.1} parent=1 // pred_fallthru
      _
    // Predicated region
    $region22: #{generator_forward.1} parent=1 // pred_check
      _
    $region23: #{generator_forward.1} parent=1 // pred_check_branch
      %24 = sbr.rel (0) target = $region25
    $region24: #{generator_forward.1} parent=1 // pred_region
      _
    $region25: #{generator_forward.1} parent=1 // pred_fallthru
      _
    // Predicated region
    $region26: #{generator_forward.1} parent=1 // pred_check
      _
    $region27: #{generator_forward.1} parent=1 // pred_check_branch
      %26 = sbr.rel (0) target = $region29
    $region28: #{generator_forward.1} parent=1 // pred_region
      _
    $region29: #{generator_forward.1} parent=1 // pred_fallthru
      _
    %v28 = vld [vmem:[%s0] sm:$0xff]
    %v29 = vpack.c.bf16 %v28, %v28
    %v30 = vld [vmem:[%s1] sm:$0xf]
    %v31 = vld [vmem:[%s1 + $0x4] sm:$0xf]
    %v32 = vld [vmem:[%s2] sm:$0xff]
    %v33 = vld [vmem:[%s2 + $0x8] sm:$0x7f]
    %35 = vset.pattern.permute.xlu0 0
    %36 = vperm.xlu0 %35, %v32
    %v37 = vpop.permute.xlu0 %36
    %40 = vset.pattern.permute.xlu0 0
    %41 = vperm.xlu0 %40, %v33
    %v42 = vpop.permute.xlu0 %41
    %v46 = vunpack.c.l.b16 %v30
    %v47 = vunpack.c.l.b16 %v31
    %v48 = vpack.c.b16 %v47, %v46
    %vm49 = vcmask 261120
    %v51 = vsel %vm49, %v48, 0
    %v54 = vsel %vm49, %v29, 0
    %56 = vmatprep.subr.bf16.mxu0 0
    %57 = vmatpush1.bf16.xpose.msra.mxu0 0
    %58 = vmatprep.subr.bf16.mxu0 0
    %59 = vmatpush1.bf16.xpose.msra.mxu0 0
    %60 = vmatprep.subr.bf16.mxu0 0
    %61 = vmatpush1.bf16.xpose.msra.mxu0 0
    %62 = vmatprep.subr.bf16.mxu0 0
    %63 = vmatpush1.bf16.xpose.msra.mxu0 0
    %64 = vmatprep.subr.bf16.mxu0 0
    %65 = vmatpush1.bf16.xpose.msra.mxu0 0
    %66 = vmatprep.subr.bf16.mxu0 0
    %67 = vmatpush1.bf16.xpose.msra.mxu0 0
    %68 = vmatprep.subr.bf16.mxu0 0
    %69 = vmatpush1.bf16.xpose.msra.mxu0 0
    %70 = vmatprep.subr.bf16.mxu0 0
    %71 = vmatpush1.bf16.xpose.msra.mxu0 %v54
    %72 = vmatprep.subr.bf16.mxu0 0
    %73 = vmatpush2.bf16.xpose.msra.mxu0 0
    %74 = vmatprep.subr.bf16.mxu0 0
    %75 = vmatpush2.bf16.xpose.msra.mxu0 0
    %76 = vmatprep.subr.bf16.mxu0 0
    %77 = vmatpush2.bf16.xpose.msra.mxu0 0
    %78 = vmatprep.subr.bf16.mxu0 0
    %79 = vmatpush2.bf16.xpose.msra.mxu0 0
    %80 = vmatprep.subr.bf16.mxu0 0
    %81 = vmatpush2.bf16.xpose.msra.mxu0 0
    %82 = vmatprep.subr.bf16.mxu0 0
    %83 = vmatpush2.bf16.xpose.msra.mxu0 0
    %84 = vmatprep.subr.bf16.mxu0 0
    %85 = vmatpush2.bf16.xpose.msra.mxu0 0
    %86 = vmatprep.subr.bf16.mxu0 0
    %87 = vmatpush2.bf16.xpose.msra.mxu0 0
    %88 = vmatprep.mubr.bf16.mxu0 0
    %89 = vmatmul.mubr.bf16.gmra.mxu0 %v51
    %v90 = vpop.f32.mrf.mxu0
    %v91 = vadd.f32 %v37, %v90
    %v92 = vpop.f32.mrf.mxu0
    %v93 = vpop.f32.mrf.mxu0
    %v94 = vadd.f32 %v42, %v93
    %v95 = vpop.f32.mrf.mxu0
    %96 = vdwg.mxu0
    %v97 = vmax.f32 %v91, 0.0
    %v98 = vmax.f32 %v94, 0.0
    %v99 = vld [vmem:[%s3] sm:$0xf]
    %v100 = vld [vmem:[%s3 + $0x4] sm:$0xf]
    %v101 = vld [vmem:[%s3 + $0x8] sm:$0xf]
    %v102 = vld [vmem:[%s3 + $0xc] sm:$0x1]
    %v103 = vpack.c.bf16 %v98, %v97
    %v104 = vld [vmem:[%s4] sm:$0xff]
    %v105 = vld [vmem:[%s4 + $0x8] sm:$0xff]
    %v106 = vld [vmem:[%s4 + $0x10] sm:$0xff]
    %v107 = vld [vmem:[%s4 + $0x18] sm:$0x1]
    %109 = vset.pattern.permute.xlu0 0
    %110 = vperm.xlu0 %109, %v104
    %v111 = vpop.permute.xlu0 %110
    %114 = vset.pattern.permute.xlu0 0
    %115 = vperm.xlu0 %114, %v105
    %v116 = vpop.permute.xlu0 %115
    %119 = vset.pattern.permute.xlu0 0
    %120 = vperm.xlu0 %119, %v106
    %v121 = vpop.permute.xlu0 %120
    %124 = vset.pattern.permute.xlu0 0
    %125 = vperm.xlu0 %124, %v107
    %v126 = vpop.permute.xlu0 %125
    %v132 = vunpack.c.l.b16 %v99
    %v133 = vunpack.c.l.b16 %v100
    %v134 = vunpack.c.l.b16 %v101
    %v135 = vunpack.c.l.b16 %v102
    %v136 = vpack.c.b16 %v133, %v132
    %v137 = vpack.c.b16 %v135, %v134
    %vm138 = vcmask 121856
    %v140 = vsel %vm138, %v136, 0
    %v143 = vsel %vm138, %v137, 0
    %vm145 = vcmask 1046528
    %vm146 = vcmask 1047552
    %v147 = vsel %vm145, 4294967295, 65535
    %v148 = vsel %vm146, %v147, 0
    %v150 = vand.u32 %v103, %v148
    %152 = vmatprep.subr.bf16.mxu0 0
    %153 = vmatpush1.bf16.msra.mxu0 0
    %154 = vmatprep.subr.bf16.mxu0 0
    %155 = vmatpush1.bf16.msra.mxu0 0
    %156 = vmatprep.subr.bf16.mxu0 0
    %157 = vmatpush1.bf16.msra.mxu0 0
    %158 = vmatprep.subr.bf16.mxu0 0
    %159 = vmatpush1.bf16.msra.mxu0 0
    %160 = vmatprep.subr.bf16.mxu0 0
    %161 = vmatpush1.bf16.msra.mxu0 0
    %162 = vmatprep.subr.bf16.mxu0 0
    %163 = vmatpush1.bf16.msra.mxu0 0
    %164 = vmatprep.subr.bf16.mxu0 0
    %165 = vmatpush1.bf16.msra.mxu0 0
    %166 = vmatprep.subr.bf16.mxu0 0
    %167 = vmatpush1.bf16.msra.mxu0 %v150
    %168 = vmatprep.subr.bf16.mxu0 0
    %169 = vmatpush2.bf16.msra.mxu0 0
    %170 = vmatprep.subr.bf16.mxu0 0
    %171 = vmatpush2.bf16.msra.mxu0 0
    %172 = vmatprep.subr.bf16.mxu0 0
    %173 = vmatpush2.bf16.msra.mxu0 0
    %174 = vmatprep.subr.bf16.mxu0 0
    %175 = vmatpush2.bf16.msra.mxu0 0
    %176 = vmatprep.subr.bf16.mxu0 0
    %177 = vmatpush2.bf16.msra.mxu0 0
    %178 = vmatprep.subr.bf16.mxu0 0
    %179 = vmatpush2.bf16.msra.mxu0 0
    %180 = vmatprep.subr.bf16.mxu0 0
    %181 = vmatpush2.bf16.msra.mxu0 0
    %182 = vmatprep.subr.bf16.mxu0 0
    %183 = vmatpush2.bf16.msra.mxu0 0
    %184 = vmatprep.mubr.bf16.mxu0 0
    %185 = vmatmul.mubr.bf16.gmra.mxu0 %v140
    %v186 = vpop.f32.mrf.mxu0
    %v187 = vadd.f32 %v111, %v186
    %v188 = vpop.f32.mrf.mxu0
    %v189 = vpop.f32.mrf.mxu0
    %v190 = vadd.f32 %v116, %v189
    %v191 = vpop.f32.mrf.mxu0
    %192 = vmatprep.mubr.bf16.mxu0 0
    %193 = vmatmul.mubr.bf16.gmra.mxu0 %v143
    %v194 = vpop.f32.mrf.mxu0
    %v195 = vadd.f32 %v121, %v194
    %v196 = vpop.f32.mrf.mxu0
    %v197 = vpop.f32.mrf.mxu0
    %v198 = vadd.f32 %v126, %v197
    %v199 = vpop.f32.mrf.mxu0
    %200 = vdwg.mxu0
    %v201 = vmax.f32 %v187, 0.0
    %v202 = vmax.f32 %v190, 0.0
    %v203 = vmax.f32 %v195, 0.0
    %v204 = vmax.f32 %v198, 0.0
    %v205 = vld [vmem:[%s5] sm:$0x3]
    %v206 = vpack.c.bf16 %v202, %v201
    %v207 = vpack.c.bf16 %v204, %v203
    %v208 = vld [vmem:[%s6] sm:$0x7]
    %210 = vset.pattern.permute.xlu0 0
    %211 = vperm.xlu0 %210, %v208
    %v212 = vpop.permute.xlu0 %211
    %vm214 = vcmask 203776
    %v216 = vsel %vm214, %v205, 0
    %vm218 = vcmask 1043456
    %vm219 = vcmask 1044480
    %v220 = vsel %vm218, 4294967295, 65535
    %v221 = vsel %vm219, %v220, 0
    %v223 = vand.u32 %v207, %v221
    %225 = vmatprep.subr.bf16.mxu0 0
    %226 = vmatpush1.bf16.msra.mxu0 0
    %227 = vmatprep.subr.bf16.mxu0 0
    %228 = vmatpush1.bf16.msra.mxu0 0
    %229 = vmatprep.subr.bf16.mxu0 0
    %230 = vmatpush1.bf16.msra.mxu0 0
    %231 = vmatprep.subr.bf16.mxu0 0
    %232 = vmatpush1.bf16.msra.mxu0 0
    %233 = vmatprep.subr.bf16.mxu0 0
    %234 = vmatpush1.bf16.msra.mxu0 0
    %235 = vmatprep.subr.bf16.mxu0 0
    %236 = vmatpush1.bf16.msra.mxu0 0
    %237 = vmatprep.subr.bf16.mxu0 0
    %238 = vmatpush1.bf16.msra.mxu0 %v223
    %239 = vmatprep.subr.bf16.mxu0 0
    %240 = vmatpush1.bf16.msra.mxu0 %v206
    %241 = vmatprep.subr.bf16.mxu0 0
    %242 = vmatpush2.bf16.msra.mxu0 0
    %243 = vmatprep.subr.bf16.mxu0 0
    %244 = vmatpush2.bf16.msra.mxu0 0
    %245 = vmatprep.subr.bf16.mxu0 0
    %246 = vmatpush2.bf16.msra.mxu0 0
    %247 = vmatprep.subr.bf16.mxu0 0
    %248 = vmatpush2.bf16.msra.mxu0 0
    %249 = vmatprep.subr.bf16.mxu0 0
    %250 = vmatpush2.bf16.msra.mxu0 0
    %251 = vmatprep.subr.bf16.mxu0 0
    %252 = vmatpush2.bf16.msra.mxu0 0
    %253 = vmatprep.subr.bf16.mxu0 0
    %254 = vmatpush2.bf16.msra.mxu0 0
    %255 = vmatprep.subr.bf16.mxu0 0
    %256 = vmatpush2.bf16.msra.mxu0 0
    %257 = vmatprep.mubr.bf16.mxu0 0
    %258 = vmatmul.mubr.bf16.gmra.mxu0 %v216
    %v259 = vpop.f32.mrf.mxu0
    %v260 = vadd.f32 %v212, %v259
    %v261 = vpop.f32.mrf.mxu0
    %v262 = vpop.f32.mrf.mxu0
    %v263 = vpop.f32.mrf.mxu0
    %264 = vdwg.mxu0
    %v265 = vtanh.pop %v260
    %vm266 = vcmask 59392
    %267 = vst.msk [vmem:[#allocation2] sm:$0x7] %vm266, %v265
    // Predicated region
    $region30: #{generator_forward.1} parent=1 // pred_check
      _
    $region31: #{generator_forward.1} parent=1 // pred_check_branch
      %269 = sbr.rel (0) target = $region33
    $region32: #{generator_forward.1} parent=1 // pred_region
      %s271 = ssub.s32 64, 64
      %272 = vsyncadd [#allocation3], %s271
      %s274 = sshll.u32 [#allocation2], 4
      %s275 = int_to_ptr.vmem [resolvable:$true] %s274
      %277 = dma.vmem_to_hbm [thread:$0]  %s275, 64, %s7, [#allocation3]
    $region33: #{generator_forward.1} parent=1 // pred_fallthru
      _
    // Predicated region
    $region34: #{generator_forward.1} parent=1 // pred_check
      _
    $region35: #{generator_forward.1} parent=1 // pred_check_branch
      %279 = sbr.rel (0) target = $region37
    $region36: #{generator_forward.1} parent=1 // pred_region
      %280 = dma.done [#allocation3], 64
    $region37: #{generator_forward.1} parent=1 // pred_fallthru
      _
    %281 = vsyncpa [#allocation3], 1

</llo_original>
